<compile_context>
chip_gen: v7x
topology: tpu7x:2x2x1
jax: 0.10.0
libtpu: 0.0.40
codegen_flags: <defaults>
</compile_context>

<pallas_src>
import jax
import jax.numpy as jnp
import numpy as np
from jax.experimental import pallas as pl
from jax.experimental.pallas import tpu as pltpu


# --------------------------------------------------------------------------
# Kernel 1: one-shot, numerically stable logsumexp over the whole w row.
# Runs once per forward, regardless of how many batch tiles follow.
# --------------------------------------------------------------------------
def _lse_kernel(w_ref, lse_ref):
    w_row = w_ref[...]                                        # (1, N) f32
    m = jnp.max(w_row, axis=-1, keepdims=True)                # (1, 1)
    lse_ref[...] = m + jnp.log(
        jnp.sum(jnp.exp(w_row - m), axis=-1, keepdims=True))  # (1, 1)


# --------------------------------------------------------------------------
# Kernel 2 (primary): direct lane gather from the VMEM-resident w row.
# --------------------------------------------------------------------------
def _marginal_kernel_gather(idx_ref, w_ref, lse_ref, o_ref):
    # idx_ref: (1, TB) int32   lane-dense batch tile of indices
    # w_ref:   (1, N)  f32     resident weight row (fetched once)
    # lse_ref: (1, 1)  f32     resident precomputed logsumexp
    # o_ref:   (1, TB) f32     lane-dense output tile
    # TODO(synk): out-of-range indices silently gather a clamped value
    # (PyTorch would raise).
    idx = idx_ref[...]                                        # (1, TB)
    w_row = w_ref[...]                                        # (1, N)
    gathered = jnp.take_along_axis(w_row, idx, axis=1)        # (1, TB) lane gather
    o_ref[...] = gathered - lse_ref[...]                      # broadcast (1,1)


# --------------------------------------------------------------------------
# Kernel 2 (compatibility fallback): one-hot gather in 128-wide category
# chunks, f32 one-hot (exact 0/1) so gathered values keep full f32 precision.
# Only used if the dynamic lane gather above fails to lower on this Mosaic
# build; it keeps the intermediate at (<=128, TB) per chunk.
# --------------------------------------------------------------------------
def _marginal_kernel_onehot(idx_ref, w_ref, lse_ref, o_ref):
    idx = idx_ref[...]                                        # (1, TB) int32
    tb = idx.shape[1]
    n = w_ref.shape[1]
    acc = jnp.zeros((1, tb), jnp.float32)
    for start in range(0, n, 128):                            # static chunking
        size = min(128, n - start)
        w_c = w_ref[:, start:start + size]                    # (1, size) static slice
        cat = jax.lax.broadcasted_iota(jnp.int32, (size, tb), 0) + start
        onehot = (cat == idx).astype(jnp.float32)             # (size, TB) exact 0/1
        acc = acc + jnp.dot(w_c, onehot, preferred_element_type=jnp.float32)
    o_ref[...] = acc - lse_ref[...]


def marginal_forward(w, inputs):
    """w: (N,) float params; inputs: (B, 1) int indices -> (B,) float32."""
    N = int(w.shape[0])
    B = int(inputs.shape[0])

    # Pure reshapes (no padding copy of w).
    w_row = w.reshape(1, N).astype(jnp.float32)               # (1, N)
    idx = inputs.reshape(B).astype(jnp.int32)                 # (B,)

    # Large lane-dense batch tiles: up to 4096 lanes -> 16 KiB output stores,
    # few grid steps.  idx is padded only to the 128-lane boundary if ragged;
    # padded slots gather w[0] and are sliced off below.
    TB = min(4096, pl.cdiv(B, 128) * 128)
    B_pad = pl.cdiv(B, TB) * TB
    if B_pad != B:
        idx = jnp.pad(idx, (0, B_pad - B))
    idx_row = idx.reshape(1, B_pad)

    # ---- pass 1: logsumexp(w), computed exactly once ----
    lse = pl.pallas_call(
        _lse_kernel,
        out_shape=jax.ShapeDtypeStruct((1, 1), jnp.float32),
        grid_spec=pltpu.PrefetchScalarGridSpec(
            num_scalar_prefetch=0,
            grid=(1,),
            in_specs=[pl.BlockSpec((1, N), lambda i: (0, 0))],   # full block
            out_specs=pl.BlockSpec((1, 1), lambda i: (0, 0))),
    )(w_row)

    # ---- pass 2: gather w[idx] - lse over a 1-D batch grid ----
    grid = (B_pad // TB,)

    def run(kernel):
        return pl.pallas_call(
            kernel,
            out_shape=jax.ShapeDtypeStruct((1, B_pad), jnp.float32),
            grid_spec=pltpu.PrefetchScalarGridSpec(
                num_scalar_prefetch=0,
                grid=grid,
                in_specs=[
                    pl.BlockSpec((1, TB), lambda b: (0, b)),   # idx tile (lane-dense)
                    pl.BlockSpec((1, N), lambda b: (0, 0)),    # w: resident, fetched once
                    pl.BlockSpec((1, 1), lambda b: (0, 0)),    # lse: resident
                ],
                out_specs=pl.BlockSpec((1, TB), lambda b: (0, b))),
            compiler_params=pltpu.CompilerParams(
                dimension_semantics=("parallel",)),            # v7x: shard batch tiles
        )(idx_row, w_row, lse)

    try:
        out = run(_marginal_kernel_gather)
        jax.block_until_ready(out)
    except Exception:
        # TODO(synk): drop this fallback once dynamic lane gather lowering is
        # guaranteed on all target Mosaic builds.
        out = run(_marginal_kernel_onehot)

    return out[0, :B]


if __name__ == "__main__":
    key = jax.random.PRNGKey(0)
    N = 16   # number of categories
    B = 8    # batch of index queries

    k_w, k_idx = jax.random.split(key)
    # Module inits w to zeros; use small random values so the gather and
    # logsumexp paths are actually exercised.
    w = jax.random.normal(k_w, (N,), dtype=jnp.float32) * 0.1
    inputs = jax.random.randint(k_idx, (B, 1), 0, N, dtype=jnp.int32)

    out = marginal_forward(w, inputs)
    jax.block_until_ready(out)

    # pure-JAX reference
    cste = jax.scipy.special.logsumexp(w)
    ref = w[inputs[:, 0]] - cste

    assert out.shape == (B,)
    assert np.allclose(np.asarray(out), np.asarray(ref), atol=1e-5, rtol=1e-5)
    print("KERNEL_OK")
</pallas_src>

<mosaic_0001>
module attributes {stable_mosaic.version = 11 : i64} {
  func.func @_lse_kernel(%arg0: i32, %arg1: memref<1x16xf32, #tpu.memory_space<vmem>>, %arg2: memref<1x1xf32, #tpu.memory_space<vmem>>) attributes {dimension_semantics = [#tpu.dimension_semantics<arbitrary>], iteration_bounds = array<i64: 1>, scalar_prefetch = 0 : i64, scratch_operands = 0 : i64, tpu.core_type = #tpu.core_type<tc>, window_params = [{pipeline_mode = #tpu.pipeline_mode<synchronous>, transform_indices = @transform_0, window_bounds = array<i64: 1, 16>}, {pipeline_mode = #tpu.pipeline_mode<synchronous>, transform_indices = @transform_1, window_bounds = array<i64: 1, 1>}]} {
    %c0 = arith.constant 0 : index
    %c0_0 = arith.constant 0 : index
    %0 = vector.load %arg1[%c0, %c0_0] : memref<1x16xf32, #tpu.memory_space<vmem>>, vector<1x16xf32>
    %cst = arith.constant dense<0xFF800000> : vector<1xf32>
    %1 = vector.multi_reduction <maximumf>, %0, %cst [1] : vector<1x16xf32> to vector<1xf32>
    %2 = vector.shape_cast %1 : vector<1xf32> to vector<1x1xf32>
    %3 = vector.broadcast %2 : vector<1x1xf32> to vector<1x16xf32>
    %4 = arith.subf %0, %3 : vector<1x16xf32>
    %5 = math.exp %4 : vector<1x16xf32>
    %cst_1 = arith.constant dense<0.000000e+00> : vector<1xf32>
    %6 = vector.multi_reduction <add>, %5, %cst_1 [1] : vector<1x16xf32> to vector<1xf32>
    %7 = vector.shape_cast %6 : vector<1xf32> to vector<1x1xf32>
    %8 = math.log %7 : vector<1x1xf32>
    %9 = arith.addf %2, %8 : vector<1x1xf32>
    %c0_2 = arith.constant 0 : index
    %c0_3 = arith.constant 0 : index
    %10 = vector.load %arg2[%c0_2, %c0_3] : memref<1x1xf32, #tpu.memory_space<vmem>>, vector<1x1xf32>
    tpu.vector_store %arg2[%c0_2, %c0_3], %9 {strides = array<i32>} : memref<1x1xf32, #tpu.memory_space<vmem>>, vector<1x1xf32>,
    return
  }
  func.func @transform_0(%arg0: i32) -> (i32, i32) {
    %c0_i32 = arith.constant 0 : i32
    %c0_i32_0 = arith.constant 0 : i32
    %c0_i32_1 = arith.constant 0 : i32
    return %c0_i32, %c0_i32_0 : i32, i32
  }
  func.func @transform_1(%arg0: i32) -> (i32, i32) {
    %c0_i32 = arith.constant 0 : i32
    %c0_i32_0 = arith.constant 0 : i32
    %c0_i32_1 = arith.constant 0 : i32
    return %c0_i32, %c0_i32_0 : i32, i32
  }
}

</mosaic_0001>

<llo_original>
// kernel: tpu_custom_call.1
$region0: #{tpu_custom_call.1}
  #allocation0 [shape = 'u32[]', space=smem, size = 0x4, offset = 0x4, fixed_abs, tag = 'smem constant byte address 0x4 - core index']
  #allocation1 [shape = 'u32[144,128]{1,0:T(1,128)}', space=vmem, size = 0x12000, scoped, tag = 'internal scratch']
  %s0 = inlined_call_operand.hbm [shape: f32[1,16], index: 0, kind: input, shape index: {}]
  %s1 = inlined_call_operand.hbm [shape: f32[1,1], index: 1, kind: output, shape index: {}]
  %s2 = sld [smem:[#allocation0]]
  $region18: #{tpu_custom_call.1} parent=0
    _
  %s4 = ssub.s32 1, %s2
  %s5 = scalar_select 0, %s4, %s2
  $region1: #{tpu_custom_call.1} parent=0
    #allocation2 [shape = 'u8[512]{0}', space=vmem, size = 0x400, scoped, tag = 'input window, operand 0, single buffered']
    #allocation3 [shape = 's32[1]{0}', space=sflag, size = 0x4, scoped, tag = 'scoped memory for tpu_custom_call.1']
    #allocation4 [shape = 's32[1]{0}', space=sflag, size = 0x4, scoped, tag = 'scoped memory for tpu_custom_call.1']
    #allocation5 [shape = 'u8[512]{0}', space=vmem, size = 0x400, scoped, tag = 'output window, operand 0, single buffered']
    %6 = vsyncpa [#allocation3], 0
    %7 = vsyncpa [#allocation4], 0
    // Predicated region
    $region2: #{tpu_custom_call.1} parent=1 // pred_check
      _
    $region3: #{tpu_custom_call.1} parent=1 // pred_check_branch
      %9 = sbr.rel (0) target = $region5
    $region4: #{tpu_custom_call.1} parent=1 // pred_region
      %s11 = ssub.s32 16, 16
      %12 = vsyncadd [#allocation3], %s11
      %s14 = sshll.u32 [#allocation2], 4
      %s15 = int_to_ptr.vmem [resolvable:$true] %s14
      %17 = dma.hbm_to_vmem [thread:$0]  %s0, 16, %s15, [#allocation3]
    $region5: #{tpu_custom_call.1} parent=1 // pred_fallthru
      _
    // Predicated region
    $region6: #{tpu_custom_call.1} parent=1 // pred_check
      _
    $region7: #{tpu_custom_call.1} parent=1 // pred_check_branch
      %19 = sbr.rel (0) target = $region9
    $region8: #{tpu_custom_call.1} parent=1 // pred_region
      %20 = dma.done [#allocation3], 16
    $region9: #{tpu_custom_call.1} parent=1 // pred_fallthru
      _
    %v21 = vld [vmem:[#allocation2] sm:$0x1]
    %vm22 = vcmask 122880
    %v23 = vsel %vm22, %v21, -inf
    %24 = vmax.xlane.f32.xlu0 %v23
    %v25 = vpop.xlane.xlu0 %24
    %v26 = vsub.f32 %v21, %v25
    %v27 = vmul.f32 %v26, 1.442695
    %v28 = vpow.pop %v27
    %v29 = vsel %vm22, %v28, 0.0
    %30 = vadd.xlane.f32.xlu0 %v29
    %v31 = vpop.xlane.xlu0 %30
    %v32 = vlog2.pop %v31
    %v33 = vmul.f32 %v32, 0.6931472
    %v34 = vadd.f32 %v25, %v33
    %vm35 = vcmask 0
    %36 = vst.msk [vmem:[#allocation5] sm:$0x1] %vm35, %v34
    // Predicated region
    $region10: #{tpu_custom_call.1} parent=1 // pred_check
      _
    $region11: #{tpu_custom_call.1} parent=1 // pred_check_branch
      %38 = sbr.rel (0) target = $region13
    $region12: #{tpu_custom_call.1} parent=1 // pred_region
      %s40 = ssub.s32 16, 16
      %41 = vsyncadd [#allocation4], %s40
      %s43 = sshll.u32 [#allocation5], 4
      %s44 = int_to_ptr.vmem [resolvable:$true] %s43
      %46 = dma.vmem_to_hbm [thread:$0]  %s44, 16, %s1, [#allocation4]
    $region13: #{tpu_custom_call.1} parent=1 // pred_fallthru
      _
    // Predicated region
    $region14: #{tpu_custom_call.1} parent=1 // pred_check
      _
    $region15: #{tpu_custom_call.1} parent=1 // pred_check_branch
      %48 = sbr.rel (0) target = $region17
    $region16: #{tpu_custom_call.1} parent=1 // pred_region
      %49 = dma.done [#allocation4], 16
    $region17: #{tpu_custom_call.1} parent=1 // pred_fallthru
      _
    %50 = vsyncpa [#allocation3], 1
    %51 = vsyncpa [#allocation4], 1

</llo_original>
